<compile_context>
chip_gen: v5e
topology: v5e:2x2
jax: 0.10.0
libtpu: 0.0.40
codegen_flags: <defaults>
</compile_context>

<pallas_src>
import collections
import numpy as np

import jax
import jax.numpy as jnp
from jax.experimental import pallas as pl
from jax.experimental.pallas import tpu as pltpu


# ---------------------------------------------------------------------------
# View-spec namedtuples + get_view_args (ported from mlmisc/view.py)
# ---------------------------------------------------------------------------
Join = collections.namedtuple('Join', 'n', defaults=(2,))
Keep = collections.namedtuple('Keep', 'n', defaults=(1,))
Seek = collections.namedtuple('Seek', 'n')
Split = collections.namedtuple('Split', 'n')


def get_view_args(shape, dims):
  args, pos = ([], 0)
  for d in dims:
    if isinstance(d, int):
      args.append(d)
    elif isinstance(d, Seek):
      pos = d.n
    elif isinstance(d, Keep):
      for i in range(d.n):
        args.append(shape[pos + i])
      pos += d.n
    elif isinstance(d, Join):
      # TODO(synk): original code references d.s (not a Join field) and thus
      # raises AttributeError; kept faithful to the PyTorch source.
      args.append(int(np.prod(shape[d.s:d.s + d.n])))
      pos += d.n
    elif isinstance(d, Split):
      assert shape[pos] % abs(d.n) == 0, (
          f'Split dimension must be multiple: shape={shape} '
          f'dim={shape[pos]} n={d.n}')
      if d.n > 0:
        args.append(d.n)
        args.append(shape[pos] // d.n)
      else:
        args.append(shape[pos] // -d.n)
        args.append(-d.n)
      pos += 1
  return args


# ---------------------------------------------------------------------------
# Pallas kernel: large-tile, lane-dense identity copy (optional materialize)
# ---------------------------------------------------------------------------
def _copy_kernel(x_ref, o_ref):
  o_ref[...] = x_ref[...]


# Lane-dense widths to try (largest first); all multiples of 128.
_LANE_WIDTHS = (8192, 4096, 2048, 1024, 512, 256, 128)
# ~4 MiB per block: with double-buffered input + output buffers this is
# ~16 MiB of VMEM, which fits the scoped budget on v5e/v6e and v7x (64 MiB
# physical / 32 MiB scoped) while staying at ~85%+ of HBM roofline.
_TILE_BYTES = 4 * 1024 * 1024


def _pallas_contiguous_copy(flat):
  """Copy a 1-D contiguous array through VMEM with large lane-dense tiles."""
  n = int(flat.shape[0])
  itemsize = jnp.dtype(flat.dtype).itemsize

  width = next((w for w in _LANE_WIDTHS if n % w == 0), None)
  padded = False
  if width is None:
    # TODO(synk): sizes that are not a multiple of 128 fall back to a single
    # pad/slice pass (rare for NCHW activations).
    width = 1024
    pad = (-n) % width
    flat = jnp.pad(flat, (0, pad))
    padded = True

  rows = int(flat.shape[0]) // width
  x2d = flat.reshape(rows, width)

  # Rows per block: as many as fit the tile-byte budget, rounded to a
  # multiple of 32 (covers f32/bf16/int8 sublane packing).
  max_block_rows = max(32, (_TILE_BYTES // (width * itemsize)) // 32 * 32)
  if rows <= max_block_rows:
    block_rows = rows          # single block == full array (always legal)
    grid = (1,)
  else:
    block_rows = max_block_rows
    grid = (pl.cdiv(rows, block_rows),)   # partial last block handled by masking

  out2d = pl.pallas_call(
      _copy_kernel,
      out_shape=jax.ShapeDtypeStruct((rows, width), flat.dtype),
      grid_spec=pltpu.PrefetchScalarGridSpec(
          num_scalar_prefetch=0,
          grid=grid,
          in_specs=[pl.BlockSpec((block_rows, width), lambda i: (i, 0))],
          out_specs=pl.BlockSpec((block_rows, width), lambda i: (i, 0)),
      ),
      compiler_params=pltpu.CompilerParams(
          dimension_semantics=("parallel",),      # lets v7x shard across 2 TCs
          vmem_limit_bytes=64 << 20,
      ),
      cost_estimate=pl.CostEstimate(
          flops=0, transcendentals=0, bytes_accessed=2 * n * itemsize),
  )(x2d)

  out_flat = out2d.reshape(-1)
  if padded:
    out_flat = out_flat[:n]
  return out_flat


# ---------------------------------------------------------------------------
# View module equivalent
# ---------------------------------------------------------------------------
class View:
  """JAX/Pallas equivalent of mlmisc.view.View (no parameters).

  Default path is metadata-only (jnp.reshape), matching the true cost of
  torch.view on contiguous tensors.  Pass materialize=True to force a
  physical copy through the Pallas streaming-copy kernel.
  """

  def __init__(self, *dims, materialize=False):
    self.dims = dims
    self.materialize = materialize

  def __call__(self, x):
    vdims = [int(v) for v in get_view_args(x.shape, self.dims)]
    if not self.materialize:
      # Contiguous view == pure metadata; no kernel, no HBM traffic.
      return x.reshape(*vdims)
    out_flat = _pallas_contiguous_copy(x.reshape(-1))
    return out_flat.reshape(*vdims)


# ---------------------------------------------------------------------------
# Demo / self-test
# ---------------------------------------------------------------------------
if __name__ == "__main__":
  key = jax.random.PRNGKey(0)
  # NCHW input, as the PyTorch module would typically see.
  x = jax.random.normal(key, (2, 4, 16, 16), dtype=jnp.float32)

  # Fast (metadata-only) path: View(Keep(1), Split(2), Keep(2))
  # (2, 4, 16, 16) -> (2, 2, 2, 16, 16)
  view = View(Keep(1), Split(2), Keep(2))
  y = jax.block_until_ready(view(x))
  vdims = [int(v) for v in get_view_args(x.shape, view.dims)]
  y_ref = x.reshape(*vdims)
  assert y.shape == (2, 2, 2, 16, 16), y.shape
  assert y.dtype == x.dtype
  np.testing.assert_array_equal(np.asarray(y), np.asarray(y_ref))

  # Materialized path exercises the Pallas copy kernel (lane-dense tiles).
  view_mat = View(Keep(1), Split(2), Keep(2), materialize=True)
  y_mat = jax.block_until_ready(view_mat(x))
  np.testing.assert_array_equal(np.asarray(y_mat), np.asarray(y_ref))

  # Second spec mixing int / -1: (2, 4, 16, 16) -> (8, 256), via Pallas copy.
  view2 = View(8, -1, materialize=True)
  y2 = jax.block_until_ready(view2(x))
  np.testing.assert_array_equal(np.asarray(y2), np.asarray(x.reshape(8, -1)))

  print("KERNEL_OK")
</pallas_src>

<mosaic_0001>
module attributes {stable_mosaic.version = 11 : i64} {
  func.func @_copy_kernel(%arg0: i32, %arg1: memref<1x2048xf32, #tpu.memory_space<vmem>>, %arg2: memref<1x2048xf32, #tpu.memory_space<vmem>>) attributes {dimension_semantics = [#tpu.dimension_semantics<parallel>], iteration_bounds = array<i64: 1>, scalar_prefetch = 0 : i64, scratch_operands = 0 : i64, tpu.core_type = #tpu.core_type<tc>, window_params = [{transform_indices = @transform_0, window_bounds = array<i64: 1, 2048>}, {transform_indices = @transform_1, window_bounds = array<i64: 1, 2048>}]} {
    %c0 = arith.constant 0 : index
    %c0_0 = arith.constant 0 : index
    %0 = vector.load %arg1[%c0, %c0_0] : memref<1x2048xf32, #tpu.memory_space<vmem>>, vector<1x2048xf32>
    %c0_1 = arith.constant 0 : index
    %c0_2 = arith.constant 0 : index
    %1 = vector.load %arg2[%c0_1, %c0_2] : memref<1x2048xf32, #tpu.memory_space<vmem>>, vector<1x2048xf32>
    tpu.vector_store %arg2[%c0_1, %c0_2], %0 {strides = array<i32>} : memref<1x2048xf32, #tpu.memory_space<vmem>>, vector<1x2048xf32>,
    return
  }
  func.func @transform_0(%arg0: i32) -> (i32, i32) {
    %c0_i32 = arith.constant 0 : i32
    %c0_i32_0 = arith.constant 0 : i32
    return %arg0, %c0_i32 : i32, i32
  }
  func.func @transform_1(%arg0: i32) -> (i32, i32) {
    %c0_i32 = arith.constant 0 : i32
    %c0_i32_0 = arith.constant 0 : i32
    return %arg0, %c0_i32 : i32, i32
  }
}

</mosaic_0001>

<llo_original>
// kernel: tpu_custom_call.1
$region0: #{tpu_custom_call.1}
  #allocation0 [shape = 'u32[]', space=smem, size = 0x4, offset = 0x4, fixed_abs, tag = 'smem constant byte address 0x4 - core index']
  #allocation1 [shape = 'u32[72,128]{1,0:T(1,128)}', space=vmem, size = 0x9000, scoped, tag = 'internal scratch']
  %s0 = inlined_call_operand.hbm [shape: f32[1,2048], index: 0, kind: input, shape index: {}]
  %s1 = inlined_call_operand.hbm [shape: f32[1,2048], index: 1, kind: output, shape index: {}]
  %s2 = sld [smem:[#allocation0]]
  $region18: #{tpu_custom_call.1} parent=0
    _
  %s4 = ssub.s32 1, %s2
  %s5 = scalar_select 0, %s4, %s2
  $region1: #{tpu_custom_call.1} parent=0
    #allocation2 [shape = 'u8[8192]{0}', space=vmem, size = 0x2000, scoped, tag = 'input window, operand 0, single buffered']
    #allocation3 [shape = 's32[1]{0}', space=sflag, size = 0x4, scoped, tag = 'scoped memory for tpu_custom_call.1']
    #allocation4 [shape = 's32[1]{0}', space=sflag, size = 0x4, scoped, tag = 'scoped memory for tpu_custom_call.1']
    #allocation5 [shape = 'u8[8192]{0}', space=vmem, size = 0x2000, scoped, tag = 'output window, operand 0, single buffered']
    %6 = vsyncpa [#allocation3], 0
    %7 = vsyncpa [#allocation4], 0
    // Predicated region
    $region2: #{tpu_custom_call.1} parent=1 // pred_check
      _
    $region3: #{tpu_custom_call.1} parent=1 // pred_check_branch
      %9 = sbr.rel (0) target = $region5
    $region4: #{tpu_custom_call.1} parent=1 // pred_region
      %11 = vsyncadd [#allocation3], 0
      %s13 = sshll.u32 %s0, 4
      %s14 = int_to_ptr.hbm [resolvable:$true] %s13
      %s15 = sshll.u32 [#allocation2], 4
      %s16 = int_to_ptr.vmem [resolvable:$true] %s15
      %18 = dma.hbm_to_vmem [thread:$0]  %s14, 256, %s16, [#allocation3]
    $region5: #{tpu_custom_call.1} parent=1 // pred_fallthru
      _
    // Predicated region
    $region6: #{tpu_custom_call.1} parent=1 // pred_check
      _
    $region7: #{tpu_custom_call.1} parent=1 // pred_check_branch
      %20 = sbr.rel (0) target = $region9
    $region8: #{tpu_custom_call.1} parent=1 // pred_region
      %22 = dma.done [#allocation3], 256
    $region9: #{tpu_custom_call.1} parent=1 // pred_fallthru
      _
    %v23 = vld [vmem:[#allocation2] sm:$0xff]
    %v24 = vld [vmem:[#allocation2 + $0x8] sm:$0xff]
    %25 = vst [vmem:[#allocation5] sm:$0xff] %v23
    %26 = vst [vmem:[#allocation5 + $0x8] sm:$0xff] %v24
    // Predicated region
    $region10: #{tpu_custom_call.1} parent=1 // pred_check
      _
    $region11: #{tpu_custom_call.1} parent=1 // pred_check_branch
      %28 = sbr.rel (0) target = $region13
    $region12: #{tpu_custom_call.1} parent=1 // pred_region
      %30 = vsyncadd [#allocation4], 0
      %s32 = sshll.u32 [#allocation5], 4
      %s33 = int_to_ptr.vmem [resolvable:$true] %s32
      %s34 = sshll.u32 %s1, 4
      %s35 = int_to_ptr.hbm [resolvable:$true] %s34
      %37 = dma.vmem_to_hbm [thread:$0]  %s33, 256, %s35, [#allocation4]
    $region13: #{tpu_custom_call.1} parent=1 // pred_fallthru
      _
    // Predicated region
    $region14: #{tpu_custom_call.1} parent=1 // pred_check
      _
    $region15: #{tpu_custom_call.1} parent=1 // pred_check_branch
      %39 = sbr.rel (0) target = $region17
    $region16: #{tpu_custom_call.1} parent=1 // pred_region
      %41 = dma.done [#allocation4], 256
    $region17: #{tpu_custom_call.1} parent=1 // pred_fallthru
      _
    %42 = vsyncpa [#allocation3], 1
    %43 = vsyncpa [#allocation4], 1

</llo_original>
